<compile_context>
chip_gen: v5e
topology: v5e:2x2
jax: 0.10.0
libtpu: 0.0.40
codegen_flags: <defaults>
</compile_context>

<pallas_src>
import functools

import jax
import jax.numpy as jnp
from jax import lax
from jax.experimental import pallas as pl
from jax.experimental.pallas import tpu as pltpu


def sinusoidal_pos_encoding(max_len, d_model, dtype=jnp.float32):
    """Classic transformer positional encoding (the PositionEmbedding buffer)."""
    pos = jnp.arange(max_len, dtype=jnp.float32)[:, None]          # (L, 1)
    i = jnp.arange(0, d_model, 2, dtype=jnp.float32)[None, :]      # (1, ceil(D/2))
    angle = pos / jnp.power(10000.0, i / d_model)                  # (L, ceil(D/2))
    pe = jnp.zeros((max_len, d_model), dtype=jnp.float32)
    pe = pe.at[:, 0::2].set(jnp.sin(angle))
    pe = pe.at[:, 1::2].set(jnp.cos(angle)[:, : d_model // 2])     # odd-d_model safe
    return pe.astype(dtype)


# ----------------------------------------------------------------- resident (small vocab)
def _resident_embed_kernel(ids_ref, emb_ref, pos_ref, out_ref, *,
                           ts, vocab, slab, pos_len, pos_resident):
    """ids_ref (ts,1) i32 | emb_ref (V,D) VMEM | pos_ref VMEM | out_ref (ts,D).

    Small-vocab gather: slab-wise one-hot(ids) @ table on the MXU, accumulated in f32.
    """
    d = out_ref.shape[1]
    ids = ids_ref[...]                                              # (ts, 1) int32
    col = lax.broadcasted_iota(jnp.int32, (ts, slab), 1)            # (ts, slab)
    acc = jnp.zeros((ts, d), jnp.float32)
    for off in range(0, vocab, slab):                               # static, unrolled
        width = min(slab, vocab - off)
        onehot = (ids == (col[:, :width] + off)).astype(emb_ref.dtype)
        acc = acc + jnp.dot(onehot, emb_ref[off:off + width, :],
                            preferred_element_type=jnp.float32)

    if pos_resident:
        start = pl.multiple_of((pl.program_id(0) * ts) % pos_len, 8)
        pos_tile = pos_ref[pl.ds(start, ts), :]
    else:
        pos_tile = pos_ref[...]
    out_ref[...] = (acc + pos_tile.astype(jnp.float32)).astype(out_ref.dtype)


def _resident_call(ids2d, emb_table, pos_buf, ts, num_tiles, pos_resident):
    n, _ = ids2d.shape
    v, d = emb_table.shape
    # Pad vocab to a multiple of 8 so slab slices stay sublane-aligned.  Padded rows can
    # never be selected because ids are clamped to < v in the wrapper.
    v_pad = ((v + 7) // 8) * 8
    if v_pad != v:
        emb_table = jnp.pad(emb_table, ((0, v_pad - v), (0, 0)))

    pos_len = pos_buf.shape[0]
    pos_blocks = pos_len // ts
    slab = min(256, v_pad)

    kern = functools.partial(_resident_embed_kernel, ts=ts, vocab=v_pad, slab=slab,
                             pos_len=pos_len, pos_resident=pos_resident)

    if pos_resident:
        pos_spec = pl.BlockSpec((pos_len, d), lambda i: (0, 0))     # fetched once
    else:
        pos_spec = pl.BlockSpec((ts, d), lambda i: (i % pos_blocks, 0))

    return pl.pallas_call(
        kern,
        out_shape=jax.ShapeDtypeStruct((n, d), emb_table.dtype),
        grid=(num_tiles,),
        in_specs=[
            pl.BlockSpec((ts, 1), lambda i: (i, 0)),                # token-id tile
            pl.BlockSpec((v_pad, d), lambda i: (0, 0)),             # full table resident
            pos_spec,
        ],
        out_specs=pl.BlockSpec((ts, d), lambda i: (i, 0)),
        compiler_params=pltpu.CompilerParams(dimension_semantics=("parallel",)),
    )(ids2d, emb_table, pos_buf)


# ----------------------------------------------------------------- streaming (large vocab)
def _stream_embed_kernel(ids_ref, emb_hbm, pos_ref, out_ref, row_buf, sem, *,
                         ts, inner, pos_len, pos_resident):
    """ids_ref SMEM (N,) i32 | emb_hbm HBM (V,D) | pos_ref VMEM | out_ref (ts,D)
       row_buf VMEM (2,ts,D) | sem DMA (2,)

    Grid is (outer, inner).  Row gather for tile `lin` is DMA'd from HBM; tile lin+1's
    gather is started before tile lin is consumed (double-buffered across inner steps).
    The pipeline is primed at inner==0, so each core primes itself if the outer axis is
    sharded across TensorCores.
    """
    o = pl.program_id(0)
    j = pl.program_id(1)
    lin = o * inner + j
    slot = j % 2

    def gather_tile(tile_lin, slot_idx):
        base = tile_lin * ts

        def body(t, carry):
            tok = ids_ref[base + t]                                 # scalar from SMEM
            pltpu.make_async_copy(
                emb_hbm.at[pl.ds(tok, 1), :],
                row_buf.at[slot_idx, pl.ds(t, 1), :],
                sem.at[slot_idx]).start()
            return carry

        lax.fori_loop(0, ts, body, 0)

    @pl.when(j == 0)                                                # prime this core
    def _():
        gather_tile(lin, slot)

    @pl.when(j + 1 < inner)                                         # prefetch next tile
    def _():
        gather_tile(lin + 1, 1 - slot)

    # Wait for all ts row copies of the current slot: ts waits, each matching the size
    # of one start descriptor (one row), against the same per-slot semaphore.
    def wait_body(t, carry):
        pltpu.make_async_copy(
            emb_hbm.at[pl.ds(0, 1), :],
            row_buf.at[slot, pl.ds(t, 1), :],
            sem.at[slot]).wait()
        return carry

    lax.fori_loop(0, ts, wait_body, 0)

    if pos_resident:
        start = pl.multiple_of((lin * ts) % pos_len, 8)
        pos_tile = pos_ref[pl.ds(start, ts), :]
    else:
        pos_tile = pos_ref[...]

    out_ref[...] = (row_buf[slot].astype(jnp.float32)
                    + pos_tile.astype(jnp.float32)).astype(out_ref.dtype)


def _stream_call(ids_flat, emb_table, pos_buf, ts, num_tiles, pos_resident):
    n = ids_flat.shape[0]
    _, d = emb_table.shape
    pos_len = pos_buf.shape[0]
    pos_blocks = pos_len // ts

    # Split the tile range 2-ways on the leading ("parallel") axis when possible so the
    # work can shard across v7x's two TensorCores; inner axis stays sequential.
    oc = 2 if (num_tiles % 2 == 0 and num_tiles >= 2) else 1
    inner = num_tiles // oc

    kern = functools.partial(_stream_embed_kernel, ts=ts, inner=inner,
                             pos_len=pos_len, pos_resident=pos_resident)

    if pos_resident:
        pos_spec = pl.BlockSpec((pos_len, d), lambda o, j, ids: (0, 0))   # fetched once
    else:
        pos_spec = pl.BlockSpec((ts, d),
                                lambda o, j, ids: ((o * inner + j) % pos_blocks, 0))

    grid_spec = pltpu.PrefetchScalarGridSpec(
        num_scalar_prefetch=1,                                      # ids land in SMEM
        grid=(oc, inner),
        in_specs=[
            pl.BlockSpec(memory_space=pl.ANY),                      # table stays in HBM
            pos_spec,
        ],
        out_specs=pl.BlockSpec((ts, d), lambda o, j, ids: (o * inner + j, 0)),
        scratch_shapes=[
            pltpu.VMEM((2, ts, d), emb_table.dtype),                # double-buffered rows
            pltpu.SemaphoreType.DMA((2,)),                          # one sem per slot
        ],
    )
    return pl.pallas_call(
        kern,
        out_shape=jax.ShapeDtypeStruct((n, d), emb_table.dtype),
        grid_spec=grid_spec,
        compiler_params=pltpu.CompilerParams(
            dimension_semantics=("parallel", "arbitrary")),
    )(ids_flat, emb_table, pos_buf)


# ----------------------------------------------------------------- wrapper
def _choose_tile(bc, s_pad, cap):
    """Largest sublane-aligned token tile that keeps tiles within a single sequence
    (ts | s_pad) or spans whole sequences (ts = k*s_pad with k | bc)."""
    if s_pad <= cap:
        k = 1
        for cand in range(min(bc, cap // s_pad), 0, -1):
            if bc % cand == 0:
                k = cand
                break
        return k * s_pad
    ts = 8
    for cand in range(cap, 7, -1):
        if s_pad % cand == 0 and cand % 8 == 0:
            ts = cand
            break
    return ts


def _embed_chunk(ids_c, emb_table, pos_pad, cap, stream):
    bc, s_pad = ids_c.shape
    _, d = emb_table.shape

    ts = _choose_tile(bc, s_pad, cap)
    n = bc * s_pad
    num_tiles = n // ts

    # Positional addend buffer of length L = max(ts, s_pad); row r corresponds to
    # position ((tile_start + r) % s_pad) for every tile.
    if ts >= s_pad:
        reps = ts // s_pad
        pos_buf = jnp.tile(pos_pad, (reps, 1)) if reps > 1 else pos_pad
    else:
        pos_buf = pos_pad

    # Resident pos only when its (double-buffered) VMEM cost is small; otherwise fall
    # back to per-tile fetches (v7x has only 64 MiB physical VMEM).
    pos_bytes = pos_buf.shape[0] * d * pos_buf.dtype.itemsize
    pos_resident = (2 * pos_bytes) <= (4 << 20)

    ids_flat = ids_c.reshape(n)
    if stream:
        out2d = _stream_call(ids_flat, emb_table, pos_buf, ts, num_tiles, pos_resident)
    else:
        out2d = _resident_call(ids_flat.reshape(n, 1), emb_table, pos_buf, ts,
                               num_tiles, pos_resident)
    return out2d.reshape(bc, s_pad, d)


def transformer_embedding(ids, emb_table, pos_enc_full, drop_prob=0.1, *,
                          token_tile=None, stream_table=None,
                          max_tokens_per_call=1 << 16):
    """Forward of TransformerEmbedding: emb[ids] + pos_enc[:S]; dropout = identity (eval)."""
    b, s = ids.shape
    v, d = emb_table.shape
    out_dtype = emb_table.dtype

    # Clamp ids so OOB ids can never issue an OOB HBM DMA (and match resident behavior).
    ids = jnp.clip(ids.astype(jnp.int32), 0, v - 1)

    # Pad the sequence to a sublane-aligned length; tail rows are sliced off at the end.
    s_pad = ((s + 7) // 8) * 8
    pos = pos_enc_full[:s].astype(out_dtype)
    if s_pad != s:
        ids = jnp.pad(ids, ((0, 0), (0, s_pad - s)))
        pos = jnp.pad(pos, ((0, s_pad - s), (0, 0)))

    # Path selection: the one-hot/MXU gather only wins for small vocabularies (v5e MXU
    # and d_model<256 considerations); otherwise stream table rows from HBM.
    if stream_table is None:
        table_bytes = v * d * emb_table.dtype.itemsize
        stream_table = (v > 1024) or (table_bytes > (2 << 20))

    # Tile cap: target >= ~256-512 KB output tiles (dtype/D aware), at most 512 rows.
    row_bytes = d * emb_table.dtype.itemsize
    cap = max(8, min(512, ((512 * 1024) // row_bytes) // 8 * 8))
    if token_tile is not None:
        cap = max(8, min(cap, (token_tile // 8) * 8))

    # Bound SMEM for the scalar-prefetched ids by chunking the streaming call over batch.
    rows_per_call = b if not stream_table else max(1, max_tokens_per_call // s_pad)

    outs = []
    for b0 in range(0, b, rows_per_call):
        outs.append(_embed_chunk(ids[b0:b0 + rows_per_call], emb_table, pos,
                                 cap, stream_table))
    out = outs[0] if len(outs) == 1 else jnp.concatenate(outs, axis=0)

    # Dropout: eval/inference mode -> identity.
    # TODO(synk): train-mode dropout (p=drop_prob) via pltpu.prng_seed/prng_random_bits.
    return out[:, :s, :]


if __name__ == "__main__":
    key = jax.random.PRNGKey(0)
    k_ids, k_emb, k_ids2, k_emb2 = jax.random.split(key, 4)

    # --- Config 1: small vocab, resident one-hot/MXU path -------------------------------
    vocab_size, d_model, max_len, batch, seq_len = 64, 128, 16, 2, 8
    ids = jax.random.randint(k_ids, (batch, seq_len), 0, vocab_size, dtype=jnp.int32)
    emb_table = jax.random.normal(k_emb, (vocab_size, d_model), dtype=jnp.float32)
    pos_full = sinusoidal_pos_encoding(max_len, d_model)
    ref = emb_table[ids] + pos_full[:seq_len][None, :, :]

    out_res = jax.block_until_ready(transformer_embedding(ids, emb_table, pos_full, 0.1))
    assert out_res.shape == (batch, seq_len, d_model)
    assert jnp.allclose(out_res, ref, atol=1e-5, rtol=1e-5)

    # --- Config 2: same data, streaming path forced, small tile to exercise the
    #               double-buffered gather and the (parallel, arbitrary) 2-level grid ----
    out_str = jax.block_until_ready(
        transformer_embedding(ids, emb_table, pos_full, 0.1,
                              stream_table=True, token_tile=8))
    assert jnp.allclose(out_str, ref, atol=1e-5, rtol=1e-5)

    # --- Config 3: non-multiple-of-8 sequence (padding path) + streaming, resident pos
    #               sliced dynamically in-kernel --------------------------------------
    seq3 = 12
    ids3 = jax.random.randint(k_ids2, (batch, seq3), 0, vocab_size, dtype=jnp.int32)
    ref3 = emb_table[ids3] + pos_full[:seq3][None, :, :]
    out3 = jax.block_until_ready(
        transformer_embedding(ids3, emb_table, pos_full, 0.1,
                              stream_table=True, token_tile=8))
    assert out3.shape == (batch, seq3, d_model)
    assert jnp.allclose(out3, ref3, atol=1e-5, rtol=1e-5)

    # --- Config 4: larger vocab within resident threshold, exercises the vocab-slab loop
    vocab4 = 640
    emb4 = jax.random.normal(k_emb2, (vocab4, d_model), dtype=jnp.float32)
    ids4 = jax.random.randint(k_ids, (batch, seq_len), 0, vocab4, dtype=jnp.int32)
    ref4 = emb4[ids4] + pos_full[:seq_len][None, :, :]
    out4 = jax.block_until_ready(transformer_embedding(ids4, emb4, pos_full, 0.1))
    assert jnp.allclose(out4, ref4, atol=1e-5, rtol=1e-5)

    print("KERNEL_OK")
</pallas_src>

<mosaic_0001>
module attributes {stable_mosaic.version = 11 : i64} {
  func.func @_resident_embed_kernel(%arg0: i32, %arg1: memref<16x1xi32, #tpu.memory_space<vmem>>, %arg2: memref<64x128xf32, #tpu.memory_space<vmem>>, %arg3: memref<16x128xf32, #tpu.memory_space<vmem>>, %arg4: memref<16x128xf32, #tpu.memory_space<vmem>>) attributes {dimension_semantics = [#tpu.dimension_semantics<parallel>], iteration_bounds = array<i64: 1>, scalar_prefetch = 0 : i64, scratch_operands = 0 : i64, tpu.core_type = #tpu.core_type<tc>, window_params = [{transform_indices = @transform_0, window_bounds = array<i64: 16, 1>}, {pipeline_mode = #tpu.pipeline_mode<synchronous>, transform_indices = @transform_1, window_bounds = array<i64: 64, 128>}, {pipeline_mode = #tpu.pipeline_mode<synchronous>, transform_indices = @transform_2, window_bounds = array<i64: 16, 128>}, {transform_indices = @transform_3, window_bounds = array<i64: 16, 128>}]} {
    %c0 = arith.constant 0 : index
    %c0_0 = arith.constant 0 : index
    %0 = vector.load %arg1[%c0, %c0_0] : memref<16x1xi32, #tpu.memory_space<vmem>>, vector<16x1xi32>
    %1 = tpu.iota {dimensions = array<i32: 1>} : vector<16x64xi32>
    %cst = arith.constant 0.000000e+00 : f32
    %2 = vector.broadcast %cst : f32 to vector<16x128xf32>
    %c0_i32 = arith.constant 0 : i32
    %3 = vector.broadcast %c0_i32 : i32 to vector<16x64xi32>
    %4 = arith.addi %1, %3 : vector<16x64xi32>
    %5 = vector.broadcast %0 : vector<16x1xi32> to vector<16x64xi32>
    %6 = arith.cmpi eq, %5, %4 : vector<16x64xi32>
    %7 = arith.extui %6 : vector<16x64xi1> to vector<16x64xi32>
    %8 = arith.sitofp %7 : vector<16x64xi32> to vector<16x64xf32>
    %c0_1 = arith.constant 0 : index
    %c0_2 = arith.constant 0 : index
    %9 = vector.load %arg2[%c0_1, %c0_2] : memref<64x128xf32, #tpu.memory_space<vmem>>, vector<64x128xf32>
    %cst_3 = arith.constant dense<0.000000e+00> : vector<16x128xf32>
    %10 = tpu.matmul %8, %9, %cst_3 {dimension_numbers = #tpu.dot_dimension_numbers<[1], [0], [0], [1], [0, 0, 1, 1], [], []>} : vector<16x64xf32>, vector<64x128xf32>, vector<16x128xf32> -> vector<16x128xf32>
    %11 = arith.addf %2, %10 : vector<16x128xf32>
    %c16_i32 = arith.constant 16 : i32
    %12 = arith.muli %arg0, %c16_i32 : i32
    %c16_i32_4 = arith.constant 16 : i32
    %c0_i32_5 = arith.constant 0 : i32
    %13 = arith.cmpi eq, %c16_i32_4, %c0_i32_5 : i32
    %c1_i32 = arith.constant 1 : i32
    %14 = arith.select %13, %c1_i32, %c16_i32_4 : i32
    %15 = arith.remsi %12, %14 : i32
    %c0_i32_6 = arith.constant 0 : i32
    %16 = arith.cmpi ne, %15, %c0_i32_6 : i32
    %c0_i32_7 = arith.constant 0 : i32
    %17 = arith.cmpi slt, %15, %c0_i32_7 : i32
    %c0_i32_8 = arith.constant 0 : i32
    %18 = arith.cmpi slt, %14, %c0_i32_8 : i32
    %19 = arith.xori %17, %18 : i1
    %20 = arith.andi %19, %16 : i1
    %21 = arith.addi %15, %14 : i32
    %22 = arith.select %20, %21, %15 : i32
    %23 = tpu.assume_multiple %22, 8 : i32
    %24 = arith.index_cast %23 : i32 to index
    %c0_9 = arith.constant 0 : index
    %25 = vector.load %arg3[%24, %c0_9] : memref<16x128xf32, #tpu.memory_space<vmem>>, vector<16x128xf32>
    %26 = arith.addf %11, %25 : vector<16x128xf32>
    %c0_10 = arith.constant 0 : index
    %c0_11 = arith.constant 0 : index
    %27 = vector.load %arg4[%c0_10, %c0_11] : memref<16x128xf32, #tpu.memory_space<vmem>>, vector<16x128xf32>
    tpu.vector_store %arg4[%c0_10, %c0_11], %26 {strides = array<i32>} : memref<16x128xf32, #tpu.memory_space<vmem>>, vector<16x128xf32>,
    return
  }
  func.func @transform_0(%arg0: i32) -> (i32, i32) {
    %c0_i32 = arith.constant 0 : i32
    %c0_i32_0 = arith.constant 0 : i32
    return %arg0, %c0_i32 : i32, i32
  }
  func.func @transform_1(%arg0: i32) -> (i32, i32) {
    %c0_i32 = arith.constant 0 : i32
    %c0_i32_0 = arith.constant 0 : i32
    %c0_i32_1 = arith.constant 0 : i32
    return %c0_i32, %c0_i32_0 : i32, i32
  }
  func.func @transform_2(%arg0: i32) -> (i32, i32) {
    %c0_i32 = arith.constant 0 : i32
    %c0_i32_0 = arith.constant 0 : i32
    %c0_i32_1 = arith.constant 0 : i32
    return %c0_i32, %c0_i32_0 : i32, i32
  }
  func.func @transform_3(%arg0: i32) -> (i32, i32) {
    %c0_i32 = arith.constant 0 : i32
    %c0_i32_0 = arith.constant 0 : i32
    return %arg0, %c0_i32 : i32, i32
  }
}

</mosaic_0001>

<llo_original>
// kernel: tpu_custom_call.1
$region0: #{tpu_custom_call.1}
  #allocation0 [shape = 'u32[]', space=smem, size = 0x4, offset = 0x4, fixed_abs, tag = 'smem constant byte address 0x4 - core index']
  #allocation1 [shape = 'u32[72,128]{1,0:T(1,128)}', space=vmem, size = 0x9000, scoped, tag = 'internal scratch']
  %s0 = inlined_call_operand.vmem [shape: s32[16,1], index: 0, kind: input, shape index: {}]
  %s1 = inlined_call_operand.hbm [shape: f32[64,128], index: 1, kind: input, shape index: {}]
  %s2 = inlined_call_operand.vmem [shape: f32[16,128], index: 2, kind: input, shape index: {}]
  %s3 = inlined_call_operand.hbm [shape: f32[16,128], index: 3, kind: output, shape index: {}]
  %s4 = sld [smem:[#allocation0]]
  $region26: #{tpu_custom_call.1} parent=0
    _
  %s6 = ssub.s32 1, %s4
  %s7 = scalar_select 0, %s6, %s4
  $region1: #{tpu_custom_call.1} parent=0
    #allocation2 [shape = 'u8[32768]{0}', space=vmem, size = 0x8000, scoped, tag = 'input window, operand 1, single buffered']
    #allocation3 [shape = 's32[1]{0}', space=sflag, size = 0x4, scoped, tag = 'scoped memory for tpu_custom_call.1']
    #allocation4 [shape = 's32[1]{0}', space=sflag, size = 0x4, scoped, tag = 'scoped memory for tpu_custom_call.1']
    #allocation5 [shape = 'u8[8192]{0}', space=vmem, size = 0x2000, scoped, tag = 'output window, operand 0, single buffered']
    %8 = vsyncpa [#allocation3], 0
    %9 = vsyncpa [#allocation4], 0
    // Predicated region
    $region2: #{tpu_custom_call.1} parent=1 // pred_check
      _
    $region3: #{tpu_custom_call.1} parent=1 // pred_check_branch
      %11 = sbr.rel (0) target = $region5
    $region4: #{tpu_custom_call.1} parent=1 // pred_region
      _
    $region5: #{tpu_custom_call.1} parent=1 // pred_fallthru
      _
    // Predicated region
    $region6: #{tpu_custom_call.1} parent=1 // pred_check
      _
    $region7: #{tpu_custom_call.1} parent=1 // pred_check_branch
      %13 = sbr.rel (0) target = $region9
    $region8: #{tpu_custom_call.1} parent=1 // pred_region
      %15 = vsyncadd [#allocation3], 0
      %s16 = sshll.u32 %s1, 4
      %s17 = int_to_ptr.hbm [resolvable:$true] %s16
      %s18 = sshll.u32 [#allocation2], 4
      %s19 = int_to_ptr.vmem [resolvable:$true] %s18
      %24 = dma.hbm_to_vmem [thread:$0]  %s17, 1024, %s19, [#allocation3], 128, 128, 8
    $region9: #{tpu_custom_call.1} parent=1 // pred_fallthru
      _
    // Predicated region
    $region10: #{tpu_custom_call.1} parent=1 // pred_check
      _
    $region11: #{tpu_custom_call.1} parent=1 // pred_check_branch
      %26 = sbr.rel (0) target = $region13
    $region12: #{tpu_custom_call.1} parent=1 // pred_region
      _
    $region13: #{tpu_custom_call.1} parent=1 // pred_fallthru
      _
    // Predicated region
    $region14: #{tpu_custom_call.1} parent=1 // pred_check
      _
    $region15: #{tpu_custom_call.1} parent=1 // pred_check_branch
      %28 = sbr.rel (0) target = $region17
    $region16: #{tpu_custom_call.1} parent=1 // pred_region
      %30 = dma.done [#allocation3], 1024
    $region17: #{tpu_custom_call.1} parent=1 // pred_fallthru
      _
    %v31 = vld [vmem:[%s0] sm:$0xff]
    %v32 = vld [vmem:[%s0 + $0x8] sm:$0xff]
    %v33 = vlaneseq
    %v34 = vand.u32 %v33, 127
    %35 = vset.pattern.permute.xlu0 0
    %36 = vperm.xlu0 %35, %v31
    %v37 = vpop.permute.xlu0 %36
    %38 = vset.pattern.permute.xlu0 0
    %39 = vperm.xlu0 %38, %v32
    %v40 = vpop.permute.xlu0 %39
    %vm41 = vcmp.eq.s32.totalorder %v37, %v34
    %vm42 = vcmp.eq.s32.totalorder %v40, %v34
    %v43 = vsel %vm41, 1, 0
    %v44 = vsel %vm42, 1, 0
    %v45 = vcvt.s32.f32 %v43
    %v46 = vcvt.s32.f32 %v44
    %v47 = vld [vmem:[#allocation2] sm:$0xff]
    %v48 = vld [vmem:[#allocation2 + $0x8] sm:$0xff]
    %v49 = vld [vmem:[#allocation2 + $0x10] sm:$0xff]
    %v50 = vld [vmem:[#allocation2 + $0x18] sm:$0xff]
    %v51 = vld [vmem:[#allocation2 + $0x20] sm:$0xff]
    %v52 = vld [vmem:[#allocation2 + $0x28] sm:$0xff]
    %v53 = vld [vmem:[#allocation2 + $0x30] sm:$0xff]
    %v54 = vld [vmem:[#allocation2 + $0x38] sm:$0xff]
    %s55 = smul.u32 0, 16
    %p56 = scmp.lt.s32.totalorder %s55, 0
    %s57 = ssub.s32 0, %s55
    %s58 = scalar_select %p56, %s57, %s55
    %s59 = sand.u32 %s58, 15
    %s60 = ssub.s32 0, %s59
    %s61 = scalar_select %p56, %s60, %s59
    %p62 = scmp.ne.s32.totalorder %s61, 0
    %p63 = scmp.lt.s32.totalorder %s61, 0
    %p64 = pnand %p63, %p62
    %p65 = pneg %p64
    %s66 = sadd.s32 %s61, 16
    %s67 = scalar_select %p65, %s66, %s61
    %s68 = scalar_lea.vmem %s2, %s67
    %v69 = vld [vmem:[%s68] sm:$0xff]
    %v70 = vld [vmem:[%s68 + $0x8] sm:$0xff]
    %vm71 = vcmask 523264
    %v73 = vsel %vm71, %v45, 0
    %v76 = vsel %vm71, %v46, 0
    %78 = vmatpush.msra.mxu0 0.0
    %79 = vmatpush.msra.mxu0 0.0
    %80 = vmatpush.msra.mxu0 0.0
    %81 = vmatpush.msra.mxu0 0.0
    %82 = vmatpush.msra.mxu0 0.0
    %83 = vmatpush.msra.mxu0 0.0
    %84 = vmatpush.msra.mxu0 0.0
    %85 = vmatpush.msra.mxu0 0.0
    %86 = vmatpush.msra.mxu0 %v54
    %87 = vmatpush.msra.mxu0 %v53
    %88 = vmatpush.msra.mxu0 %v52
    %89 = vmatpush.msra.mxu0 %v51
    %90 = vmatpush.msra.mxu0 %v50
    %91 = vmatpush.msra.mxu0 %v49
    %92 = vmatpush.msra.mxu0 %v48
    %93 = vmatpush.msra.mxu0 %v47
    %94 = vmatmul.f32.gmra.mxu0 %v73
    %v95 = vpop.f32.mrf.mxu0
    %v96 = vadd.f32 %v69, %v95
    %97 = vmatmul.f32.gmra.mxu0 %v76
    %v98 = vpop.f32.mrf.mxu0
    %v99 = vadd.f32 %v70, %v98
    %100 = vdwg.mxu0
    %101 = vst [vmem:[#allocation5] sm:$0xff] %v96
    %102 = vst [vmem:[#allocation5 + $0x8] sm:$0xff] %v99
    // Predicated region
    $region18: #{tpu_custom_call.1} parent=1 // pred_check
      _
    $region19: #{tpu_custom_call.1} parent=1 // pred_check_branch
      %104 = sbr.rel (0) target = $region21
    $region20: #{tpu_custom_call.1} parent=1 // pred_region
      %106 = vsyncadd [#allocation4], 0
      %s107 = sshll.u32 [#allocation5], 4
      %s108 = int_to_ptr.vmem [resolvable:$true] %s107
      %s109 = sshll.u32 %s3, 4
      %s110 = int_to_ptr.hbm [resolvable:$true] %s109
      %115 = dma.vmem_to_hbm [thread:$0]  %s108, 256, %s110, [#allocation4], 128, 128, 8
    $region21: #{tpu_custom_call.1} parent=1 // pred_fallthru
      _
    // Predicated region
    $region22: #{tpu_custom_call.1} parent=1 // pred_check
      _
    $region23: #{tpu_custom_call.1} parent=1 // pred_check_branch
      %117 = sbr.rel (0) target = $region25
    $region24: #{tpu_custom_call.1} parent=1 // pred_region
      %119 = dma.done [#allocation4], 256
    $region25: #{tpu_custom_call.1} parent=1 // pred_fallthru
      _
    %120 = vsyncpa [#allocation3], 1
    %121 = vsyncpa [#allocation4], 1

</llo_original>
